<compile_context>
chip_gen: v7x
topology: tpu7x:2x2x1
jax: 0.10.0
libtpu: 0.0.40
codegen_flags: <defaults>
</compile_context>

<pallas_src>
import jax
import jax.numpy as jnp
from jax import lax
from jax.experimental import pallas as pl
from jax.experimental.pallas import tpu as pltpu

CIN = 240
COUT = 40
EPS = 1e-5


def _conv_stats_kernel(se_ref, w_ref, x_ref, y_ref, sum_ref, sq_ref):
    # se_ref: (1, Cin)      SE logits (pre-sigmoid), resident in VMEM (constant block)
    # w_ref:  (Cout, Cin)   1x1 conv weight, resident in VMEM (constant block)
    # x_ref:  (Cin, TP)     input tile, channels-first
    # y_ref:  (Cout, TP)    f32 conv output tile
    # sum_ref/sq_ref: (1, Cout, 1) per-tile partial BN statistics
    #
    # Gate folded into the weight: O(Cin*Cout) work instead of O(P*Cin).
    # (Recomputed per tile: ~10 vregs of VPU work, negligible vs the matmul, and
    #  safe under "parallel" megacore sharding, unlike a pid==0 scratch init.)
    gate = jax.nn.sigmoid(se_ref[...].astype(jnp.float32))            # (1, Cin)
    w_scaled = w_ref[...].astype(jnp.float32) * gate                  # (Cout, Cin)

    # 1x1 conv == matmul on the MXU.  (If upstream activations were bf16, feed
    # them directly; here the module is f32 so the cast is a no-op.)
    y = jnp.dot(w_scaled, x_ref[...].astype(jnp.float32),
                preferred_element_type=jnp.float32)                   # (Cout, TP)
    y_ref[...] = y

    # Per-channel partial sums for BatchNorm batch statistics (XLU reductions).
    sum_ref[...] = jnp.sum(y, axis=1, keepdims=True)[None]            # (1, Cout, 1)
    sq_ref[...] = jnp.sum(y * y, axis=1, keepdims=True)[None]         # (1, Cout, 1)


def _bn_apply_kernel(scale_ref, shift_ref, y_ref, o_ref):
    # Precomputed per-channel scale/shift -> one mul + one add per element.
    o_ref[...] = (y_ref[...] * scale_ref[...] + shift_ref[...]).astype(o_ref.dtype)


def _pick_tile(p):
    # Largest "nice" multiple-of-128 tile that divides P (prefer ~512, the
    # measured HBM-roofline sweet spot); otherwise pad to 512.
    for tp in (512, 1024, 2048, 256, 128):
        if p % tp == 0:
            return tp
    return 512


def sigmoid_mul_conv_bn(x121, x125, w_oihw, gamma, beta):
    """x121: (1, Cin, H, W) NCHW, x125: (1, Cin, 1, 1). Returns (1, Cout, H, W)."""
    n, cin, h, wdim = x121.shape
    assert n == 1 and cin == CIN  # TODO(synk): N>1 needs per-sample SE gates.
    p = h * wdim

    tp = _pick_tile(p)
    p_pad = pl.cdiv(p, tp) * tp
    num_tiles = p_pad // tp

    # Channels-first (C, P) layout: pure reshapes, no transposes.
    x_cp = x121.reshape(cin, p)
    if p_pad != p:
        # Zero columns contribute 0 to sum/sumsq; stats divide by the true P below.
        x_cp = jnp.pad(x_cp, ((0, 0), (0, p_pad - p)))
    se_row = x125.reshape(1, cin)
    w_t = w_oihw.reshape(COUT, CIN)

    # ---- pass 1: sigmoid-gated 1x1 conv (matmul) + partial BN stats ----------
    y, part_sum, part_sq = pl.pallas_call(
        _conv_stats_kernel,
        grid=(num_tiles,),
        in_specs=[
            pl.BlockSpec((1, CIN), lambda i: (0, 0)),
            pl.BlockSpec((COUT, CIN), lambda i: (0, 0)),
            pl.BlockSpec((CIN, tp), lambda i: (0, i)),
        ],
        out_specs=[
            pl.BlockSpec((COUT, tp), lambda i: (0, i)),
            pl.BlockSpec((1, COUT, 1), lambda i: (i, 0, 0)),
            pl.BlockSpec((1, COUT, 1), lambda i: (i, 0, 0)),
        ],
        out_shape=[
            jax.ShapeDtypeStruct((COUT, p_pad), jnp.float32),
            jax.ShapeDtypeStruct((num_tiles, COUT, 1), jnp.float32),
            jax.ShapeDtypeStruct((num_tiles, COUT, 1), jnp.float32),
        ],
        compiler_params=pltpu.CompilerParams(
            dimension_semantics=("parallel",)),
    )(se_row, w_t, x_cp)

    # ---- tiny cross-tile reduction + BN folding (40 channels, plain JAX) -----
    sum_y = jnp.sum(part_sum, axis=0)                       # (Cout, 1)
    sum_y2 = jnp.sum(part_sq, axis=0)                       # (Cout, 1)
    inv_p = 1.0 / float(p)
    mean = sum_y * inv_p
    var = jnp.maximum(sum_y2 * inv_p - mean * mean, 0.0)    # biased var (PyTorch BN norm.)
    scale = gamma.reshape(COUT, 1) * lax.rsqrt(var + EPS)
    shift = beta.reshape(COUT, 1) - mean * scale
    # TODO(synk): running_mean/running_var momentum update (module state) is not
    # materialized; the forward output does not depend on it.

    # ---- pass 2: out = y * scale + shift, lane-dense (Cout, P) output --------
    out_cp = pl.pallas_call(
        _bn_apply_kernel,
        grid=(num_tiles,),
        in_specs=[
            pl.BlockSpec((COUT, 1), lambda i: (0, 0)),
            pl.BlockSpec((COUT, 1), lambda i: (0, 0)),
            pl.BlockSpec((COUT, tp), lambda i: (0, i)),
        ],
        out_specs=pl.BlockSpec((COUT, tp), lambda i: (0, i)),
        out_shape=jax.ShapeDtypeStruct((COUT, p_pad), x121.dtype),
        compiler_params=pltpu.CompilerParams(
            dimension_semantics=("parallel",)),
    )(scale, shift, y)

    # back to NCHW: pure slice + reshape, no transpose.
    return out_cp[:, :p].reshape(1, COUT, h, wdim)


def _reference(x121, x125, w_oihw, gamma, beta):
    # pure-JAX reference matching the PyTorch module's training-mode forward
    gate = jax.nn.sigmoid(x125)                              # (1, Cin, 1, 1)
    xs = x121 * gate
    y = jnp.einsum("nchw,oc->nohw", xs, w_oihw.reshape(COUT, CIN))
    mean = jnp.mean(y, axis=(0, 2, 3), keepdims=True)
    var = jnp.mean((y - mean) ** 2, axis=(0, 2, 3), keepdims=True)
    return (y - mean) / jnp.sqrt(var + EPS) * gamma.reshape(1, COUT, 1, 1) \
        + beta.reshape(1, COUT, 1, 1)


if __name__ == "__main__":
    key = jax.random.PRNGKey(0)
    k1, k2, k3, k4, k5 = jax.random.split(key, 5)

    # small spatial size (P = 1024 -> two 512-column tiles), module channel counts
    N, H, W = 1, 32, 32
    x121 = jax.random.normal(k1, (N, CIN, H, W), dtype=jnp.float32)
    x125 = jax.random.normal(k2, (N, CIN, 1, 1), dtype=jnp.float32)

    # deterministic synthetic parameters
    w_oihw = 0.05 * jax.random.normal(k3, (COUT, CIN, 1, 1), dtype=jnp.float32)
    gamma = 1.0 + 0.1 * jax.random.normal(k4, (COUT,), dtype=jnp.float32)
    beta = 0.1 * jax.random.normal(k5, (COUT,), dtype=jnp.float32)

    out = sigmoid_mul_conv_bn(x121, x125, w_oihw, gamma, beta)
    out = jax.block_until_ready(out)

    ref = _reference(x121, x125, w_oihw, gamma, beta)
    assert out.shape == (N, COUT, H, W)
    assert jnp.allclose(out, ref, atol=1e-4, rtol=1e-4), "mismatch vs reference"

    print("KERNEL_OK")
</pallas_src>

<mosaic_0001>
module attributes {stable_mosaic.version = 11 : i64} {
  func.func @_conv_stats_kernel(%arg0: i32, %arg1: memref<1x240xf32, #tpu.memory_space<vmem>>, %arg2: memref<40x240xf32, #tpu.memory_space<vmem>>, %arg3: memref<240x512xf32, #tpu.memory_space<vmem>>, %arg4: memref<40x512xf32, #tpu.memory_space<vmem>>, %arg5: memref<1x40x1xf32, #tpu.memory_space<vmem>>, %arg6: memref<1x40x1xf32, #tpu.memory_space<vmem>>) attributes {dimension_semantics = [#tpu.dimension_semantics<parallel>], iteration_bounds = array<i64: 2>, scalar_prefetch = 0 : i64, scratch_operands = 0 : i64, tpu.core_type = #tpu.core_type<tc>, window_params = [{pipeline_mode = #tpu.pipeline_mode<synchronous>, transform_indices = @transform_0, window_bounds = array<i64: 1, 240>}, {pipeline_mode = #tpu.pipeline_mode<synchronous>, transform_indices = @transform_1, window_bounds = array<i64: 40, 240>}, {transform_indices = @transform_2, window_bounds = array<i64: 240, 512>}, {transform_indices = @transform_3, window_bounds = array<i64: 40, 512>}, {transform_indices = @transform_4, window_bounds = array<i64: 1, 40, 1>}, {transform_indices = @transform_5, window_bounds = array<i64: 1, 40, 1>}]} {
    %c0 = arith.constant 0 : index
    %c0_0 = arith.constant 0 : index
    %0 = vector.load %arg1[%c0, %c0_0] : memref<1x240xf32, #tpu.memory_space<vmem>>, vector<1x240xf32>
    %1 = arith.negf %0 : vector<1x240xf32>
    %2 = math.exp %1 : vector<1x240xf32>
    %cst = arith.constant 1.000000e+00 : f32
    %3 = vector.broadcast %cst : f32 to vector<1x240xf32>
    %4 = arith.addf %3, %2 : vector<1x240xf32>
    %5 = arith.divf %3, %4 : vector<1x240xf32>
    %c0_1 = arith.constant 0 : index
    %c0_2 = arith.constant 0 : index
    %6 = vector.load %arg2[%c0_1, %c0_2] : memref<40x240xf32, #tpu.memory_space<vmem>>, vector<40x240xf32>
    %7 = vector.broadcast %5 : vector<1x240xf32> to vector<40x240xf32>
    %8 = arith.mulf %6, %7 : vector<40x240xf32>
    %c0_3 = arith.constant 0 : index
    %c0_4 = arith.constant 0 : index
    %9 = vector.load %arg3[%c0_3, %c0_4] : memref<240x512xf32, #tpu.memory_space<vmem>>, vector<240x512xf32>
    %cst_5 = arith.constant dense<0.000000e+00> : vector<40x512xf32>
    %10 = tpu.matmul %8, %9, %cst_5 {dimension_numbers = #tpu.dot_dimension_numbers<[1], [0], [0], [1], [0, 0, 1, 1], [], []>} : vector<40x240xf32>, vector<240x512xf32>, vector<40x512xf32> -> vector<40x512xf32>
    %c0_6 = arith.constant 0 : index
    %c0_7 = arith.constant 0 : index
    %11 = vector.load %arg4[%c0_6, %c0_7] : memref<40x512xf32, #tpu.memory_space<vmem>>, vector<40x512xf32>
    tpu.vector_store %arg4[%c0_6, %c0_7], %10 {strides = array<i32>} : memref<40x512xf32, #tpu.memory_space<vmem>>, vector<40x512xf32>,
    %cst_8 = arith.constant dense<0.000000e+00> : vector<40xf32>
    %12 = vector.multi_reduction <add>, %10, %cst_8 [1] : vector<40x512xf32> to vector<40xf32>
    %13 = vector.shape_cast %12 : vector<40xf32> to vector<40x1xf32>
    %14 = vector.shape_cast %13 : vector<40x1xf32> to vector<1x40x1xf32>
    %c0_9 = arith.constant 0 : index
    %c0_10 = arith.constant 0 : index
    %c0_11 = arith.constant 0 : index
    %15 = vector.load %arg5[%c0_9, %c0_10, %c0_11] : memref<1x40x1xf32, #tpu.memory_space<vmem>>, vector<1x40x1xf32>
    tpu.vector_store %arg5[%c0_9, %c0_10, %c0_11], %14 {strides = array<i32>} : memref<1x40x1xf32, #tpu.memory_space<vmem>>, vector<1x40x1xf32>,
    %16 = arith.mulf %10, %10 : vector<40x512xf32>
    %cst_12 = arith.constant dense<0.000000e+00> : vector<40xf32>
    %17 = vector.multi_reduction <add>, %16, %cst_12 [1] : vector<40x512xf32> to vector<40xf32>
    %18 = vector.shape_cast %17 : vector<40xf32> to vector<40x1xf32>
    %19 = vector.shape_cast %18 : vector<40x1xf32> to vector<1x40x1xf32>
    %c0_13 = arith.constant 0 : index
    %c0_14 = arith.constant 0 : index
    %c0_15 = arith.constant 0 : index
    %20 = vector.load %arg6[%c0_13, %c0_14, %c0_15] : memref<1x40x1xf32, #tpu.memory_space<vmem>>, vector<1x40x1xf32>
    tpu.vector_store %arg6[%c0_13, %c0_14, %c0_15], %19 {strides = array<i32>} : memref<1x40x1xf32, #tpu.memory_space<vmem>>, vector<1x40x1xf32>,
    return
  }
  func.func @transform_0(%arg0: i32) -> (i32, i32) {
    %c0_i32 = arith.constant 0 : i32
    %c0_i32_0 = arith.constant 0 : i32
    %c0_i32_1 = arith.constant 0 : i32
    return %c0_i32, %c0_i32_0 : i32, i32
  }
  func.func @transform_1(%arg0: i32) -> (i32, i32) {
    %c0_i32 = arith.constant 0 : i32
    %c0_i32_0 = arith.constant 0 : i32
    %c0_i32_1 = arith.constant 0 : i32
    return %c0_i32, %c0_i32_0 : i32, i32
  }
  func.func @transform_2(%arg0: i32) -> (i32, i32) {
    %c0_i32 = arith.constant 0 : i32
    %c0_i32_0 = arith.constant 0 : i32
    return %c0_i32, %arg0 : i32, i32
  }
  func.func @transform_3(%arg0: i32) -> (i32, i32) {
    %c0_i32 = arith.constant 0 : i32
    %c0_i32_0 = arith.constant 0 : i32
    return %c0_i32, %arg0 : i32, i32
  }
  func.func @transform_4(%arg0: i32) -> (i32, i32, i32) {
    %c0_i32 = arith.constant 0 : i32
    %c0_i32_0 = arith.constant 0 : i32
    %c0_i32_1 = arith.constant 0 : i32
    return %arg0, %c0_i32, %c0_i32_0 : i32, i32, i32
  }
  func.func @transform_5(%arg0: i32) -> (i32, i32, i32) {
    %c0_i32 = arith.constant 0 : i32
    %c0_i32_0 = arith.constant 0 : i32
    %c0_i32_1 = arith.constant 0 : i32
    return %arg0, %c0_i32, %c0_i32_0 : i32, i32, i32
  }
}

</mosaic_0001>

<llo_original>
// kernel: tpu_custom_call.1
$region0: #{tpu_custom_call.1}
  #allocation0 [shape = 'u32[]', space=smem, size = 0x4, offset = 0x4, fixed_abs, tag = 'smem constant byte address 0x4 - core index']
  #allocation1 [shape = 'u32[144,128]{1,0:T(1,128)}', space=vmem, size = 0x12000, scoped, tag = 'internal scratch']
  %s0 = inlined_call_operand.hbm [shape: f32[1,240], index: 0, kind: input, shape index: {}]
  %s1 = inlined_call_operand.hbm [shape: f32[40,240], index: 1, kind: input, shape index: {}]
  %s2 = inlined_call_operand.hbm [shape: f32[240,1024], index: 2, kind: input, shape index: {}]
  %s3 = inlined_call_operand.hbm [shape: f32[40,1024], index: 3, kind: output, shape index: {0}]
  %s4 = inlined_call_operand.vmem [shape: f32[2,40,1], index: 4, kind: output, shape index: {1}]
  %s5 = inlined_call_operand.vmem [shape: f32[2,40,1], index: 5, kind: output, shape index: {2}]
  %6 = xla_tuple %s3, %s4, %s5
  %s7 = sld [smem:[#allocation0]]
  $region73: #{tpu_custom_call.1} parent=0
    _
  %s9 = ssub.s32 1, %s7
  %s10 = scalar_select 0, %s9, %s7
  $region1: #{tpu_custom_call.1} parent=0
    #allocation2 [shape = 'u8[1024]{0}', space=vmem, size = 0x400, scoped, tag = 'input window, operand 0, single buffered']
    #allocation3 [shape = 's32[2]{0}', space=sflag, size = 0x8, scoped, tag = 'scoped memory for tpu_custom_call.1']
    #allocation4 [shape = 's32[2]{0}', space=sflag, size = 0x8, scoped, tag = 'scoped memory for tpu_custom_call.1']
    #allocation5 [shape = 'u8[40960]{0}', space=vmem, size = 0xa000, scoped, tag = 'input window, operand 1, single buffered']
    #allocation6 [shape = 's32[1]{0}', space=sflag, size = 0x4, scoped, tag = 'scoped memory for tpu_custom_call.1']
    #allocation7 [shape = 'u8[983040]{0}', space=vmem, size = 0xf0000, scoped, tag = 'input window, operand 2']
    #allocation8 [shape = 'u8[163840]{0}', space=vmem, size = 0x28000, scoped, tag = 'output window, operand 0']
    %11 = vsyncpa [#allocation3], 0
    %12 = vsyncpa [#allocation6], 0
    %13 = vsyncpa [#allocation4], 0
    %s14 = scalar_lea.sflag [#allocation4], 1
    %15 = vsyncpa %s14, 0
    loop: start=0, step=1, limit=4
    $region2: #{tpu_custom_call.1} parent=1 // loop_pre_header
      _
    $region3: #{tpu_custom_call.1} parent=1 // loop_header
      %s17 = sphi 0, %s21
      %p18 = scmp.ge.s32.totalorder %s17, 4
      %s25 = sphi 0, %s25
      %s27 = sphi 0, %s25
      %s28 = sphi 0, %s27
      %s42 = sphi 0, %s28
      %s46 = sphi 0, %s46
      %s48 = sphi 0, %s46
      %s49 = sphi 0, %s48
      %s63 = sphi 0, %s49
      %s69 = sphi 0, %s71
      %s72 = sphi 0, %s69
      %s73 = sphi 0, %s72
      %s89 = sphi 0, %s73
      %s95 = sphi 0, %s97
      %s98 = sphi 0, %s95
      %s99 = sphi 0, %s98
      %s115 = sphi 0, %s99
      %s121 = sphi 0, %s123
      %s124 = sphi 0, %s121
      %s125 = sphi 0, %s124
      %s141 = sphi 0, %s125
      %s147 = sphi 0, %s149
      %s150 = sphi 0, %s147
      %s151 = sphi 0, %s150
      %s167 = sphi 0, %s151
    $region4: #{tpu_custom_call.1} parent=1 // loop_header_branch
      %20 = sbr.rel (%p18) target = $region8
    $region5: #{tpu_custom_call.1} parent=1 // loop_body
      %s22 = ssub.s32 %s17, 1
      %s23 = ssub.s32 %s17, 2
      %s24 = sadd.s32 %s17, 1
      %s26 = sadd.s32 %s25, 1
      %p29 = scmp.eq.s32.totalorder %s17, 1
      %p30 = scmp.ne.s32.totalorder %s25, %s27
      %p31 = scmp.eq.s32.totalorder %s17, 0
      %p32 = por %p30, %p31
      %p33 = scmp.ne.s32.totalorder %s25, %s27
      %p34 = scmp.eq.s32.totalorder %s22, 1
      %p35 = por %p33, %p34
      %p36 = scmp.ne.s32.totalorder %s27, %s28
      %p37 = scmp.eq.s32.totalorder %s22, 0
      %p38 = por %p36, %p37
      %p39 = scmp.ne.s32.totalorder %s27, %s28
      %p40 = scmp.eq.s32.totalorder %s23, 1
      %p41 = por %p39, %p40
      %p43 = scmp.ne.s32.totalorder %s28, %s42
      %p44 = scmp.eq.s32.totalorder %s23, 0
      %p45 = por %p43, %p44
      %s47 = sadd.s32 %s46, 1
      %p50 = scmp.eq.s32.totalorder %s17, 1
      %p51 = scmp.ne.s32.totalorder %s46, %s48
      %p52 = scmp.eq.s32.totalorder %s17, 0
      %p53 = por %p51, %p52
      %p54 = scmp.ne.s32.totalorder %s46, %s48
      %p55 = scmp.eq.s32.totalorder %s22, 1
      %p56 = por %p54, %p55
      %p57 = scmp.ne.s32.totalorder %s48, %s49
      %p58 = scmp.eq.s32.totalorder %s22, 0
      %p59 = por %p57, %p58
      %p60 = scmp.ne.s32.totalorder %s48, %s49
      %p61 = scmp.eq.s32.totalorder %s23, 1
      %p62 = por %p60, %p61
      %p64 = scmp.ne.s32.totalorder %s49, %s63
      %p65 = scmp.eq.s32.totalorder %s23, 0
      %p66 = por %p64, %p65
      %s67 = ssub.s32 %s17, %s24
      %p68 = scmp.eq.s32.totalorder %s67, 0
      %s70 = sadd.s32 %s69, 1
      %s71 = scalar_select %p68, %s69, %s70
      %p74 = pneg %p68
      %p75 = scmp.eq.s32.totalorder %s17, 1
      %p76 = por %p74, %p75
      %p77 = scmp.ne.s32.totalorder %s69, %s72
      %p78 = scmp.eq.s32.totalorder %s17, 0
      %p79 = por %p77, %p78
      %p80 = scmp.ne.s32.totalorder %s69, %s72
      %p81 = scmp.eq.s32.totalorder %s22, 1
      %p82 = por %p80, %p81
      %p83 = scmp.ne.s32.totalorder %s72, %s73
      %p84 = scmp.eq.s32.totalorder %s22, 0
      %p85 = por %p83, %p84
      %p86 = scmp.ne.s32.totalorder %s72, %s73
      %p87 = scmp.eq.s32.totalorder %s23, 1
      %p88 = por %p86, %p87
      %p90 = scmp.ne.s32.totalorder %s73, %s89
      %p91 = scmp.eq.s32.totalorder %s23, 0
      %p92 = por %p90, %p91
      %s93 = ssub.s32 %s17, %s24
      %p94 = scmp.eq.s32.totalorder %s93, 0
      %s96 = sadd.s32 %s95, 1
      %s97 = scalar_select %p94, %s95, %s96
      %p100 = pneg %p94
      %p101 = scmp.eq.s32.totalorder %s17, 1
      %p102 = por %p100, %p101
      %p103 = scmp.ne.s32.totalorder %s95, %s98
      %p104 = scmp.eq.s32.totalorder %s17, 0
      %p105 = por %p103, %p104
      %p106 = scmp.ne.s32.totalorder %s95, %s98
      %p107 = scmp.eq.s32.totalorder %s22, 1
      %p108 = por %p106, %p107
      %p109 = scmp.ne.s32.totalorder %s98, %s99
      %p110 = scmp.eq.s32.totalorder %s22, 0
      %p111 = por %p109, %p110
      %p112 = scmp.ne.s32.totalorder %s98, %s99
      %p113 = scmp.eq.s32.totalorder %s23, 1
      %p114 = por %p112, %p113
      %p116 = scmp.ne.s32.totalorder %s99, %s115
      %p117 = scmp.eq.s32.totalorder %s23, 0
      %p118 = por %p116, %p117
      %s119 = ssub.s32 %s17, %s24
      %p120 = scmp.eq.s32.totalorder %s119, 0
      %s122 = sadd.s32 %s121, 1
      %s123 = scalar_select %p120, %s121, %s122
      %p126 = pneg %p120
      %p127 = scmp.eq.s32.totalorder %s17, 1
      %p128 = por %p126, %p127
      %p129 = scmp.ne.s32.totalorder %s121, %s124
      %p130 = scmp.eq.s32.totalorder %s17, 0
      %p131 = por %p129, %p130
      %p132 = scmp.ne.s32.totalorder %s121, %s124
      %p133 = scmp.eq.s32.totalorder %s22, 1
      %p134 = por %p132, %p133
      %p135 = scmp.ne.s32.totalorder %s124, %s125
      %p136 = scmp.eq.s32.totalorder %s22, 0
      %p137 = por %p135, %p136
      %p138 = scmp.ne.s32.totalorder %s124, %s125
      %p139 = scmp.eq.s32.totalorder %s23, 1
      %p140 = por %p138, %p139
      %p142 = scmp.ne.s32.totalorder %s125, %s141
      %p143 = scmp.eq.s32.totalorder %s23, 0
      %p144 = por %p142, %p143
      %s145 = ssub.s32 %s17, %s24
      %p146 = scmp.eq.s32.totalorder %s145, 0
      %s148 = sadd.s32 %s147, 1
      %s149 = scalar_select %p146, %s147, %s148
      %p152 = pneg %p146
      %p153 = scmp.eq.s32.totalorder %s17, 1
      %p154 = por %p152, %p153
      %p155 = scmp.ne.s32.totalorder %s147, %s150
      %p156 = scmp.eq.s32.totalorder %s17, 0
      %p157 = por %p155, %p156
      %p158 = scmp.ne.s32.totalorder %s147, %s150
      %p159 = scmp.eq.s32.totalorder %s22, 1
      %p160 = por %p158, %p159
      %p161 = scmp.ne.s32.totalorder %s150, %s151
      %p162 = scmp.eq.s32.totalorder %s22, 0
      %p163 = por %p161, %p162
      %p164 = scmp.ne.s32.totalorder %s150, %s151
      %p165 = scmp.eq.s32.totalorder %s23, 1
      %p166 = por %p164, %p165
      %p168 = scmp.ne.s32.totalorder %s151, %s167
      %p169 = scmp.eq.s32.totalorder %s23, 0
      %p170 = por %p168, %p169
      %p171 = scmp.le.s32.totalorder 1, %s17
      %p172 = scmp.lt.s32.totalorder %s17, 3
      %p173 = pnand %p171, %p172
      %p174 = pneg %p173
      // Predicated region
      $region9: #{tpu_custom_call.1} parent=5 // pred_check
        _
      $region10: #{tpu_custom_call.1} parent=5 // pred_check_branch
        %176 = sbr.rel (%p173) target = $region12
      $region11: #{tpu_custom_call.1} parent=5 // pred_region
        %s177 = ssub.s32 %s17, 1
        // Predicated region
        $region13: #{tpu_custom_call.1} parent=11 // pred_check
          %p178 = pneg %p38
        $region14: #{tpu_custom_call.1} parent=11 // pred_check_branch
          %180 = sbr.rel (%p178) target = $region16
        $region15: #{tpu_custom_call.1} parent=11 // pred_region
          %s182 = ssub.s32 32, 32
          %183 = vsyncadd [#allocation3], %s182
          %s185 = sshll.u32 [#allocation2], 4
          %s186 = int_to_ptr.vmem [resolvable:$true] %s185
          %188 = dma.hbm_to_vmem [thread:$0]  %s0, 32, %s186, [#allocation3]
        $region16: #{tpu_custom_call.1} parent=11 // pred_fallthru
          _
        // Predicated region
        $region17: #{tpu_custom_call.1} parent=11 // pred_check
          %p189 = pneg %p59
        $region18: #{tpu_custom_call.1} parent=11 // pred_check_branch
          %191 = sbr.rel (%p189) target = $region20
        $region19: #{tpu_custom_call.1} parent=11 // pred_region
          %s193 = ssub.s32 1280, 1280
          %194 = vsyncadd [#allocation6], %s193
          %s195 = sshll.u32 [#allocation5], 4
          %s196 = int_to_ptr.vmem [resolvable:$true] %s195
          %201 = dma.hbm_to_vmem [thread:$0]  %s1, 1280, %s196, [#allocation6], 256, 256, 16
        $region20: #{tpu_custom_call.1} parent=11 // pred_fallthru
          _
      $region12: #{tpu_custom_call.1} parent=5 // pred_fallthru
        _
      %p202 = scmp.lt.s32.totalorder %s17, 2
      // Predicated region
      $region21: #{tpu_custom_call.1} parent=5 // pred_check
        %p203 = pneg %p202
      $region22: #{tpu_custom_call.1} parent=5 // pred_check_branch
        %205 = sbr.rel (%p203) target = $region24
      $region23: #{tpu_custom_call.1} parent=5 // pred_region
        // Predicated region
        $region25: #{tpu_custom_call.1} parent=23 // pred_check
          %p206 = pneg %p79
        $region26: #{tpu_custom_call.1} parent=23 // pred_check_branch
          %208 = sbr.rel (%p206) target = $region28
        $region27: #{tpu_custom_call.1} parent=23 // pred_region
          %s209 = sand.u32 %s17, 1
          %s210 = scalar_lea.sflag [#allocation3], %s209
          %s211 = sand.u32 %s69, 1
          %s212 = smul.addr %s211, 960
          %s213 = scalar_lea.vmem [#allocation7], %s212
          %s214 = smul.u32 4, %s17
          %s216 = ssub.s32 15360, 15360
          %217 = vsyncadd %s210, %s216
          %s218 = smul.addr %s214, 128
          %s219 = scalar_lea.hbm %s2, %s218
          %s220 = sshll.u32 %s213, 4
          %s221 = int_to_ptr.vmem [resolvable:$true] %s220
          %226 = dma.hbm_to_vmem [thread:$0]  %s219, 15360, %s221, %s210, 1024, 512, 32
        $region28: #{tpu_custom_call.1} parent=23 // pred_fallthru
          _
      $region24: #{tpu_custom_call.1} parent=5 // pred_fallthru
        _
      %p227 = scmp.le.s32.totalorder 1, %s17
      %p228 = scmp.lt.s32.totalorder %s17, 3
      %p229 = pnand %p227, %p228
      %p230 = pneg %p229
      // Predicated region
      $region29: #{tpu_custom_call.1} parent=5 // pred_check
        _
      $region30: #{tpu_custom_call.1} parent=5 // pred_check_branch
        %232 = sbr.rel (%p229) target = $region32
      $region31: #{tpu_custom_call.1} parent=5 // pred_region
        %s233 = ssub.s32 %s17, 1
        // Predicated region
        $region33: #{tpu_custom_call.1} parent=31 // pred_check
          %p234 = pneg %p38
        $region34: #{tpu_custom_call.1} parent=31 // pred_check_branch
          %236 = sbr.rel (%p234) target = $region36
        $region35: #{tpu_custom_call.1} parent=31 // pred_region
          %237 = dma.done [#allocation3], 32
        $region36: #{tpu_custom_call.1} parent=31 // pred_fallthru
          _
        // Predicated region
        $region37: #{tpu_custom_call.1} parent=31 // pred_check
          %p238 = pneg %p59
        $region38: #{tpu_custom_call.1} parent=31 // pred_check_branch
          %240 = sbr.rel (%p238) target = $region40
        $region39: #{tpu_custom_call.1} parent=31 // pred_region
          %241 = dma.done [#allocation6], 1280
        $region40: #{tpu_custom_call.1} parent=31 // pred_fallthru
          _
        %s242 = sand.u32 %s22, 1
        %s243 = scalar_lea.sflag [#allocation3], %s242
        %s244 = sand.u32 %s72, 1
        %s245 = smul.addr %s244, 960
        %s246 = scalar_lea.vmem [#allocation7], %s245
        // Predicated region
        $region41: #{tpu_custom_call.1} parent=31 // pred_check
          %p247 = pneg %p85
        $region42: #{tpu_custom_call.1} parent=31 // pred_check_branch
          %249 = sbr.rel (%p247) target = $region44
        $region43: #{tpu_custom_call.1} parent=31 // pred_region
          %250 = dma.done %s243, 15360
        $region44: #{tpu_custom_call.1} parent=31 // pred_fallthru
          _
        %p251 = pneg %p38
        %p252 = pneg %p35
        %p253 = pneg %p59
        %p254 = pneg %p56
        %s255 = sand.u32 %s22, 1
        %s256 = scalar_lea.sflag [#allocation3], %s255
        %s257 = sand.u32 %s72, 1
        %s258 = smul.addr %s257, 960
        %s259 = scalar_lea.vmem [#allocation7], %s258
        %p260 = pneg %p85
        %p261 = pneg %p82
        %p262 = pneg %p111
        %p263 = pneg %p108
        %s264 = sand.u32 %s98, 1
        %s265 = scalar_lea.sflag [#allocation4], %s264
        %s266 = sand.u32 %s98, 1
        %s267 = smul.addr %s266, 160
        %s268 = scalar_lea.vmem [#allocation8], %s267
        %p269 = pneg %p137
        %p270 = pneg %p134
        %p271 = scmp.lt.s32.totalorder %s22, 1
        %s272 = scalar_select %p271, %s22, 1
        %s273 = smul.addr %s272, 5
        %s274 = smul.addr %s273, 8
        %s275 = scalar_lea.vmem %s4, %s274
        %p276 = pneg %p163
        %p277 = pneg %p160
        %p278 = scmp.lt.s32.totalorder %s22, 1
        %s279 = scalar_select %p278, %s22, 1
        %s280 = smul.addr %s279, 5
        %s281 = smul.addr %s280, 8
        %s282 = scalar_lea.vmem %s5, %s281
        %s283 = smul.u32 4, %s22
        %s284 = smul.u32 4, %s22
        %p285 = scmp.lt.s32.totalorder %s22, 1
        %s286 = scalar_select %p285, %s22, 1
        %s287 = smul.addr %s286, 5
        %s288 = smul.addr %s287, 8
        %s289 = scalar_lea.vmem %s4, %s288
        %p290 = scmp.lt.s32.totalorder %s22, 1
        %s291 = scalar_select %p290, %s22, 1
        %s292 = smul.addr %s291, 5
        %s293 = smul.addr %s292, 8
        %s294 = scalar_lea.vmem %s5, %s293
        %v295 = vld [vmem:[#allocation2] sm:$0x3]
        %v296 = vxor.u32 %v295, 2147483648
        %v297 = vmul.f32 %v296, 1.442695
        %v298 = vpow.pop %v297
        %v299 = vadd.f32 %v298, 1.0
        %v300 = vrcp.pop %v299
        %v301 = vmul.f32 1.0, %v300
        %v302 = vld [vmem:[#allocation5] sm:$0xff]
        %v303 = vld [vmem:[#allocation5 + $0x8] sm:$0xff]
        %v304 = vld [vmem:[#allocation5 + $0x10] sm:$0xff]
        %v305 = vld [vmem:[#allocation5 + $0x18] sm:$0xff]
        %v306 = vld [vmem:[#allocation5 + $0x20] sm:$0xff]
        %v307 = vld [vmem:[#allocation5 + $0x28] sm:$0xff]
        %v308 = vld [vmem:[#allocation5 + $0x30] sm:$0xff]
        %v309 = vld [vmem:[#allocation5 + $0x38] sm:$0xff]
        %v310 = vld [vmem:[#allocation5 + $0x40] sm:$0xff]
        %v311 = vld [vmem:[#allocation5 + $0x48] sm:$0xff]
        %v313 = vlaneseq
        %v314 = vshrl.u32 %v313, 7
        %v315 = vsub.s32 0, %v314
        %v316 = vrot.slane %v301, %v315
        %v317 = vlaneseq
        %v318 = vshrl.u32 %v317, 7
        %v319 = vsub.s32 1, %v318
        %v320 = vrot.slane %v301, %v319
        %v323 = vmul.f32 %v302, %v316
        %v324 = vmul.f32 %v303, %v320
        %v325 = vmul.f32 %v304, %v316
        %v326 = vmul.f32 %v305, %v320
        %v327 = vmul.f32 %v306, %v316
        %v328 = vmul.f32 %v307, %v320
        %v329 = vmul.f32 %v308, %v316
        %v330 = vmul.f32 %v309, %v320
        %v331 = vmul.f32 %v310, %v316
        %v332 = vmul.f32 %v311, %v320
        %v333 = vld [vmem:[%s246] sm:$0xff]
        %v334 = vld [vmem:[%s246 + $0x8] sm:$0xff]
        %v335 = vld [vmem:[%s246 + $0x10] sm:$0xff]
        %v336 = vld [vmem:[%s246 + $0x18] sm:$0xff]
        %v337 = vld [vmem:[%s246 + $0x20] sm:$0xff]
        %v338 = vld [vmem:[%s246 + $0x28] sm:$0xff]
        %v339 = vld [vmem:[%s246 + $0x30] sm:$0xff]
        %v340 = vld [vmem:[%s246 + $0x38] sm:$0xff]
        %v341 = vld [vmem:[%s246 + $0x40] sm:$0xff]
        %v342 = vld [vmem:[%s246 + $0x48] sm:$0xff]
        %v343 = vld [vmem:[%s246 + $0x50] sm:$0xff]
        %v344 = vld [vmem:[%s246 + $0x58] sm:$0xff]
        %v345 = vld [vmem:[%s246 + $0x60] sm:$0xff]
        %v346 = vld [vmem:[%s246 + $0x68] sm:$0xff]
        %v347 = vld [vmem:[%s246 + $0x70] sm:$0xff]
        %v348 = vld [vmem:[%s246 + $0x78] sm:$0xff]
        %v349 = vld [vmem:[%s246 + $0x80] sm:$0xff]
        %v350 = vld [vmem:[%s246 + $0x88] sm:$0xff]
        %v351 = vld [vmem:[%s246 + $0x90] sm:$0xff]
        %v352 = vld [vmem:[%s246 + $0x98] sm:$0xff]
        %v353 = vld [vmem:[%s246 + $0xa0] sm:$0xff]
        %v354 = vld [vmem:[%s246 + $0xa8] sm:$0xff]
        %v355 = vld [vmem:[%s246 + $0xb0] sm:$0xff]
        %v356 = vld [vmem:[%s246 + $0xb8] sm:$0xff]
        %v357 = vld [vmem:[%s246 + $0xc0] sm:$0xff]
        %v358 = vld [vmem:[%s246 + $0xc8] sm:$0xff]
        %v359 = vld [vmem:[%s246 + $0xd0] sm:$0xff]
        %v360 = vld [vmem:[%s246 + $0xd8] sm:$0xff]
        %v361 = vld [vmem:[%s246 + $0xe0] sm:$0xff]
        %v362 = vld [vmem:[%s246 + $0xe8] sm:$0xff]
        %v363 = vld [vmem:[%s246 + $0xf0] sm:$0xff]
        %v364 = vld [vmem:[%s246 + $0xf8] sm:$0xff]
        %v365 = vld [vmem:[%s246 + $0x100] sm:$0xff]
        %v366 = vld [vmem:[%s246 + $0x108] sm:$0xff]
        %v367 = vld [vmem:[%s246 + $0x110] sm:$0xff]
        %v368 = vld [vmem:[%s246 + $0x118] sm:$0xff]
        %v369 = vld [vmem:[%s246 + $0x120] sm:$0xff]
        %v370 = vld [vmem:[%s246 + $0x128] sm:$0xff]
        %v371 = vld [vmem:[%s246 + $0x130] sm:$0xff]
        %v372 = vld [vmem:[%s246 + $0x138] sm:$0xff]
        %v373 = vld [vmem:[%s246 + $0x140] sm:$0xff]
        %v374 = vld [vmem:[%s246 + $0x148] sm:$0xff]
        %v375 = vld [vmem:[%s246 + $0x150] sm:$0xff]
        %v376 = vld [vmem:[%s246 + $0x158] sm:$0xff]
        %v377 = vld [vmem:[%s246 + $0x160] sm:$0xff]
        %v378 = vld [vmem:[%s246 + $0x168] sm:$0xff]
        %v379 = vld [vmem:[%s246 + $0x170] sm:$0xff]
        %v380 = vld [vmem:[%s246 + $0x178] sm:$0xff]
        %v381 = vld [vmem:[%s246 + $0x180] sm:$0xff]
        %v382 = vld [vmem:[%s246 + $0x188] sm:$0xff]
        %v383 = vld [vmem:[%s246 + $0x190] sm:$0xff]
        %v384 = vld [vmem:[%s246 + $0x198] sm:$0xff]
        %v385 = vld [vmem:[%s246 + $0x1a0] sm:$0xff]
        %v386 = vld [vmem:[%s246 + $0x1a8] sm:$0xff]
        %v387 = vld [vmem:[%s246 + $0x1b0] sm:$0xff]
        %v388 = vld [vmem:[%s246 + $0x1b8] sm:$0xff]
        %v389 = vld [vmem:[%s246 + $0x1c0] sm:$0xff]
        %v390 = vld [vmem:[%s246 + $0x1c8] sm:$0xff]
        %v391 = vld [vmem:[%s246 + $0x1d0] sm:$0xff]
        %v392 = vld [vmem:[%s246 + $0x1d8] sm:$0xff]
        %v393 = vld [vmem:[%s246 + $0x1e0] sm:$0xff]
        %v394 = vld [vmem:[%s246 + $0x1e8] sm:$0xff]
        %v395 = vld [vmem:[%s246 + $0x1f0] sm:$0xff]
        %v396 = vld [vmem:[%s246 + $0x1f8] sm:$0xff]
        %v397 = vld [vmem:[%s246 + $0x200] sm:$0xff]
        %v398 = vld [vmem:[%s246 + $0x208] sm:$0xff]
        %v399 = vld [vmem:[%s246 + $0x210] sm:$0xff]
        %v400 = vld [vmem:[%s246 + $0x218] sm:$0xff]
        %v401 = vld [vmem:[%s246 + $0x220] sm:$0xff]
        %v402 = vld [vmem:[%s246 + $0x228] sm:$0xff]
        %v403 = vld [vmem:[%s246 + $0x230] sm:$0xff]
        %v404 = vld [vmem:[%s246 + $0x238] sm:$0xff]
        %v405 = vld [vmem:[%s246 + $0x240] sm:$0xff]
        %v406 = vld [vmem:[%s246 + $0x248] sm:$0xff]
        %v407 = vld [vmem:[%s246 + $0x250] sm:$0xff]
        %v408 = vld [vmem:[%s246 + $0x258] sm:$0xff]
        %v409 = vld [vmem:[%s246 + $0x260] sm:$0xff]
        %v410 = vld [vmem:[%s246 + $0x268] sm:$0xff]
        %v411 = vld [vmem:[%s246 + $0x270] sm:$0xff]
        %v412 = vld [vmem:[%s246 + $0x278] sm:$0xff]
        %v413 = vld [vmem:[%s246 + $0x280] sm:$0xff]
        %v414 = vld [vmem:[%s246 + $0x288] sm:$0xff]
        %v415 = vld [vmem:[%s246 + $0x290] sm:$0xff]
        %v416 = vld [vmem:[%s246 + $0x298] sm:$0xff]
        %v417 = vld [vmem:[%s246 + $0x2a0] sm:$0xff]
        %v418 = vld [vmem:[%s246 + $0x2a8] sm:$0xff]
        %v419 = vld [vmem:[%s246 + $0x2b0] sm:$0xff]
        %v420 = vld [vmem:[%s246 + $0x2b8] sm:$0xff]
        %v421 = vld [vmem:[%s246 + $0x2c0] sm:$0xff]
        %v422 = vld [vmem:[%s246 + $0x2c8] sm:$0xff]
        %v423 = vld [vmem:[%s246 + $0x2d0] sm:$0xff]
        %v424 = vld [vmem:[%s246 + $0x2d8] sm:$0xff]
        %v425 = vld [vmem:[%s246 + $0x2e0] sm:$0xff]
        %v426 = vld [vmem:[%s246 + $0x2e8] sm:$0xff]
        %v427 = vld [vmem:[%s246 + $0x2f0] sm:$0xff]
        %v428 = vld [vmem:[%s246 + $0x2f8] sm:$0xff]
        %v429 = vld [vmem:[%s246 + $0x300] sm:$0xff]
        %v430 = vld [vmem:[%s246 + $0x308] sm:$0xff]
        %v431 = vld [vmem:[%s246 + $0x310] sm:$0xff]
        %v432 = vld [vmem:[%s246 + $0x318] sm:$0xff]
        %v433 = vld [vmem:[%s246 + $0x320] sm:$0xff]
        %v434 = vld [vmem:[%s246 + $0x328] sm:$0xff]
        %v435 = vld [vmem:[%s246 + $0x330] sm:$0xff]
        %v436 = vld [vmem:[%s246 + $0x338] sm:$0xff]
        %v437 = vld [vmem:[%s246 + $0x340] sm:$0xff]
        %v438 = vld [vmem:[%s246 + $0x348] sm:$0xff]
        %v439 = vld [vmem:[%s246 + $0x350] sm:$0xff]
        %v440 = vld [vmem:[%s246 + $0x358] sm:$0xff]
        %v441 = vld [vmem:[%s246 + $0x360] sm:$0xff]
        %v442 = vld [vmem:[%s246 + $0x368] sm:$0xff]
        %v443 = vld [vmem:[%s246 + $0x370] sm:$0xff]
        %v444 = vld [vmem:[%s246 + $0x378] sm:$0xff]
        %v445 = vld [vmem:[%s246 + $0x380] sm:$0xff]
        %v446 = vld [vmem:[%s246 + $0x388] sm:$0xff]
        %v447 = vld [vmem:[%s246 + $0x390] sm:$0xff]
        %v448 = vld [vmem:[%s246 + $0x398] sm:$0xff]
        %v449 = vld [vmem:[%s246 + $0x3a0] sm:$0xff]
        %v450 = vld [vmem:[%s246 + $0x3a8] sm:$0xff]
        %v451 = vld [vmem:[%s246 + $0x3b0] sm:$0xff]
        %v452 = vld [vmem:[%s246 + $0x3b8] sm:$0xff]
        %vm453 = vcmask 916480
        %v455 = vsel %vm453, %v324, 0
        %v458 = vsel %vm453, %v326, 0
        %v461 = vsel %vm453, %v328, 0
        %v464 = vsel %vm453, %v330, 0
        %v467 = vsel %vm453, %v332, 0
        %469 = vmatprep.subr.mxu0 %v334
        %470 = vmatpush1.msra.mxu0 %v333
        %471 = vmatprep.subr.mxu0 %v338
        %472 = vmatpush1.msra.mxu0 %v337
        %473 = vmatprep.subr.mxu0 %v342
        %474 = vmatpush1.msra.mxu0 %v341
        %475 = vmatprep.subr.mxu0 %v346
        %476 = vmatpush1.msra.mxu0 %v345
        %477 = vmatprep.subr.mxu0 %v350
        %478 = vmatpush1.msra.mxu0 %v349
        %479 = vmatprep.subr.mxu0 %v354
        %480 = vmatpush1.msra.mxu0 %v353
        %481 = vmatprep.subr.mxu0 %v358
        %482 = vmatpush1.msra.mxu0 %v357
        %483 = vmatprep.subr.mxu0 %v362
        %484 = vmatpush1.msra.mxu0 %v361
        %485 = vmatprep.subr.mxu0 %v366
        %486 = vmatpush1.msra.mxu0 %v365
        %487 = vmatprep.subr.mxu0 %v370
        %488 = vmatpush1.msra.mxu0 %v369
        %489 = vmatprep.subr.mxu0 %v374
        %490 = vmatpush1.msra.mxu0 %v373
        %491 = vmatprep.subr.mxu0 %v378
        %492 = vmatpush1.msra.mxu0 %v377
        %493 = vmatprep.subr.mxu0 %v382
        %494 = vmatpush1.msra.mxu0 %v381
        %495 = vmatprep.subr.mxu0 %v386
        %496 = vmatpush1.msra.mxu0 %v385
        %497 = vmatprep.subr.mxu0 %v390
        %498 = vmatpush1.msra.mxu0 %v389
        %499 = vmatprep.subr.mxu0 %v394
        %500 = vmatpush1.msra.mxu0 %v393
        %501 = vmatprep.subr.mxu0 %v398
        %502 = vmatpush1.msra.mxu0 %v397
        %503 = vmatprep.subr.mxu0 %v402
        %504 = vmatpush1.msra.mxu0 %v401
        %505 = vmatprep.subr.mxu0 %v406
        %506 = vmatpush1.msra.mxu0 %v405
        %507 = vmatprep.subr.mxu0 %v410
        %508 = vmatpush1.msra.mxu0 %v409
        %509 = vmatprep.subr.mxu0 %v414
        %510 = vmatpush1.msra.mxu0 %v413
        %511 = vmatprep.subr.mxu0 %v418
        %512 = vmatpush1.msra.mxu0 %v417
        %513 = vmatprep.subr.mxu0 %v422
        %514 = vmatpush1.msra.mxu0 %v421
        %515 = vmatprep.subr.mxu0 %v426
        %516 = vmatpush1.msra.mxu0 %v425
        %517 = vmatprep.subr.mxu0 %v430
        %518 = vmatpush1.msra.mxu0 %v429
        %519 = vmatprep.subr.mxu0 %v434
        %520 = vmatpush1.msra.mxu0 %v433
        %521 = vmatprep.subr.mxu0 %v438
        %522 = vmatpush1.msra.mxu0 %v437
        %523 = vmatprep.subr.mxu0 %v442
        %524 = vmatpush1.msra.mxu0 %v441
        %525 = vmatprep.subr.mxu0 %v446
        %526 = vmatpush1.msra.mxu0 %v445
        %527 = vmatprep.subr.mxu0 %v450
        %528 = vmatpush1.msra.mxu0 %v449
        %529 = vmatprep.subr.mxu0 0.0
        %530 = vmatpush1.msra.mxu0 0.0
        %531 = vmatprep.subr.mxu0 0.0
        %532 = vmatpush1.msra.mxu0 0.0
        %533 = vmatprep.mubr.f32.mxu0 %v455
        %534 = vmatmul.mubr.f32.gmra.mrb[0].mxu0 %v323
        %v535 = vpop.f32.mrb[0].mxu0
        %v536 = vadd.f32 0.0, %v535
        %v537 = vpop.f32.mrb[0].mxu0
        %v538 = vadd.f32 0.0, %v537
        %539 = vmatprep.mubr.f32.mxu0 %v458
        %540 = vmatmul.mubr.f32.gmra.mrb[0].mxu0 %v325
        %v541 = vpop.f32.mrb[0].mxu0
        %v542 = vadd.f32 0.0, %v541
        %v543 = vpop.f32.mrb[0].mxu0
        %v544 = vadd.f32 0.0, %v543
        %545 = vmatprep.mubr.f32.mxu0 %v461
        %546 = vmatmul.mubr.f32.gmra.mrb[0].mxu0 %v327
        %v547 = vpop.f32.mrb[0].mxu0
        %v548 = vadd.f32 0.0, %v547
        %v549 = vpop.f32.mrb[0].mxu0
        %v550 = vadd.f32 0.0, %v549
        %551 = vmatprep.mubr.f32.mxu0 %v464
        %552 = vmatmul.mubr.f32.gmra.mrb[0].mxu0 %v329
        %v553 = vpop.f32.mrb[0].mxu0
        %v554 = vadd.f32 0.0, %v553
        %v555 = vpop.f32.mrb[0].mxu0
        %v556 = vadd.f32 0.0, %v555
        %557 = vmatprep.mubr.f32.mxu0 %v467
        %558 = vmatmul.mubr.f32.gmra.mrb[0].mxu0 %v331
        %v559 = vpop.f32.mrb[0].mxu0
        %v560 = vadd.f32 0.0, %v559
        %v561 = vpop.f32.mrb[0].mxu0
        %v562 = vadd.f32 0.0, %v561
        %563 = vdwg.mxu0
        %564 = vmatprep.subr.mxu0 %v336
        %565 = vmatpush1.msra.mxu0 %v335
        %566 = vmatprep.subr.mxu0 %v340
        %567 = vmatpush1.msra.mxu0 %v339
        %568 = vmatprep.subr.mxu0 %v344
        %569 = vmatpush1.msra.mxu0 %v343
        %570 = vmatprep.subr.mxu0 %v348
        %571 = vmatpush1.msra.mxu0 %v347
        %572 = vmatprep.subr.mxu0 %v352
        %573 = vmatpush1.msra.mxu0 %v351
        %574 = vmatprep.subr.mxu0 %v356
        %575 = vmatpush1.msra.mxu0 %v355
        %576 = vmatprep.subr.mxu0 %v360
        %577 = vmatpush1.msra.mxu0 %v359
        %578 = vmatprep.subr.mxu0 %v364
        %579 = vmatpush1.msra.mxu0 %v363
        %580 = vmatprep.subr.mxu0 %v368
        %581 = vmatpush1.msra.mxu0 %v367
        %582 = vmatprep.subr.mxu0 %v372
        %583 = vmatpush1.msra.mxu0 %v371
        %584 = vmatprep.subr.mxu0 %v376
        %585 = vmatpush1.msra.mxu0 %v375
        %586 = vmatprep.subr.mxu0 %v380
        %587 = vmatpush1.msra.mxu0 %v379
        %588 = vmatprep.subr.mxu0 %v384
        %589 = vmatpush1.msra.mxu0 %v383
        %590 = vmatprep.subr.mxu0 %v388
        %591 = vmatpush1.msra.mxu0 %v387
        %592 = vmatprep.subr.mxu0 %v392
        %593 = vmatpush1.msra.mxu0 %v391
        %594 = vmatprep.subr.mxu0 %v396
        %595 = vmatpush1.msra.mxu0 %v395
        %596 = vmatprep.subr.mxu0 %v400
        %597 = vmatpush1.msra.mxu0 %v399
        %598 = vmatprep.subr.mxu0 %v404
        %599 = vmatpush1.msra.mxu0 %v403
        %600 = vmatprep.subr.mxu0 %v408
        %601 = vmatpush1.msra.mxu0 %v407
        %602 = vmatprep.subr.mxu0 %v412
        %603 = vmatpush1.msra.mxu0 %v411
        %604 = vmatprep.subr.mxu0 %v416
        %605 = vmatpush1.msra.mxu0 %v415
        %606 = vmatprep.subr.mxu0 %v420
        %607 = vmatpush1.msra.mxu0 %v419
        %608 = vmatprep.subr.mxu0 %v424
        %609 = vmatpush1.msra.mxu0 %v423
        %610 = vmatprep.subr.mxu0 %v428
        %611 = vmatpush1.msra.mxu0 %v427
        %612 = vmatprep.subr.mxu0 %v432
        %613 = vmatpush1.msra.mxu0 %v431
        %614 = vmatprep.subr.mxu0 %v436
        %615 = vmatpush1.msra.mxu0 %v435
        %616 = vmatprep.subr.mxu0 %v440
        %617 = vmatpush1.msra.mxu0 %v439
        %618 = vmatprep.subr.mxu0 %v444
        %619 = vmatpush1.msra.mxu0 %v443
        %620 = vmatprep.subr.mxu0 %v448
        %621 = vmatpush1.msra.mxu0 %v447
        %622 = vmatprep.subr.mxu0 %v452
        %623 = vmatpush1.msra.mxu0 %v451
        %624 = vmatprep.subr.mxu0 0.0
        %625 = vmatpush1.msra.mxu0 0.0
        %626 = vmatprep.subr.mxu0 0.0
        %627 = vmatpush1.msra.mxu0 0.0
        %628 = vmatprep.mubr.f32.mxu0 %v455
        %629 = vmatmul.mubr.f32.gmra.mrb[0].mxu0 %v323
        %v630 = vpop.f32.mrb[0].mxu0
        %v631 = vadd.f32 0.0, %v630
        %v632 = vpop.f32.mrb[0].mxu0
        %v633 = vadd.f32 0.0, %v632
        %634 = vmatprep.mubr.f32.mxu0 %v458
        %635 = vmatmul.mubr.f32.gmra.mrb[0].mxu0 %v325
        %v636 = vpop.f32.mrb[0].mxu0
        %v637 = vadd.f32 0.0, %v636
        %v638 = vpop.f32.mrb[0].mxu0
        %v639 = vadd.f32 0.0, %v638
        %640 = vmatprep.mubr.f32.mxu0 %v461
        %641 = vmatmul.mubr.f32.gmra.mrb[0].mxu0 %v327
        %v642 = vpop.f32.mrb[0].mxu0
        %v643 = vadd.f32 0.0, %v642
        %v644 = vpop.f32.mrb[0].mxu0
        %v645 = vadd.f32 0.0, %v644
        %646 = vmatprep.mubr.f32.mxu0 %v464
        %647 = vmatmul.mubr.f32.gmra.mrb[0].mxu0 %v329
        %v648 = vpop.f32.mrb[0].mxu0
        %v649 = vadd.f32 0.0, %v648
        %v650 = vpop.f32.mrb[0].mxu0
        %v651 = vadd.f32 0.0, %v650
        %652 = vmatprep.mubr.f32.mxu0 %v467
        %653 = vmatmul.mubr.f32.gmra.mrb[0].mxu0 %v331
        %v654 = vpop.f32.mrb[0].mxu0
        %v655 = vadd.f32 0.0, %v654
        %v656 = vpop.f32.mrb[0].mxu0
        %v657 = vadd.f32 0.0, %v656
        %658 = vdwg.mxu0
        %659 = vst [vmem:[%s268] sm:$0xff] %v536
        %660 = vst [vmem:[%s268 + $0x8] sm:$0xff] %v538
        %661 = vst [vmem:[%s268 + $0x10] sm:$0xff] %v631
        %662 = vst [vmem:[%s268 + $0x18] sm:$0xff] %v633
        %663 = vst [vmem:[%s268 + $0x20] sm:$0xff] %v542
        %664 = vst [vmem:[%s268 + $0x28] sm:$0xff] %v544
        %665 = vst [vmem:[%s268 + $0x30] sm:$0xff] %v637
        %666 = vst [vmem:[%s268 + $0x38] sm:$0xff] %v639
        %667 = vst [vmem:[%s268 + $0x40] sm:$0xff] %v548
        %668 = vst [vmem:[%s268 + $0x48] sm:$0xff] %v550
        %669 = vst [vmem:[%s268 + $0x50] sm:$0xff] %v643
        %670 = vst [vmem:[%s268 + $0x58] sm:$0xff] %v645
        %671 = vst [vmem:[%s268 + $0x60] sm:$0xff] %v554
        %672 = vst [vmem:[%s268 + $0x68] sm:$0xff] %v556
        %673 = vst [vmem:[%s268 + $0x70] sm:$0xff] %v649
        %674 = vst [vmem:[%s268 + $0x78] sm:$0xff] %v651
        %675 = vst [vmem:[%s268 + $0x80] sm:$0xff] %v560
        %676 = vst [vmem:[%s268 + $0x88] sm:$0xff] %v562
        %677 = vst [vmem:[%s268 + $0x90] sm:$0xff] %v655
        %678 = vst [vmem:[%s268 + $0x98] sm:$0xff] %v657
        %v679 = vadd.f32 %v536, %v538
        %v680 = vadd.f32 %v679, %v631
        %v681 = vadd.f32 %v680, %v633
        %682 = vadd.xlane.f32.xlu0 %v681
        %v683 = vpop.xlane.xlu0 %682
        %v684 = vadd.f32 %v542, %v544
        %v685 = vadd.f32 %v684, %v637
        %v686 = vadd.f32 %v685, %v639
        %687 = vadd.xlane.f32.xlu0 %v686
        %v688 = vpop.xlane.xlu0 %687
        %v689 = vadd.f32 %v548, %v550
        %v690 = vadd.f32 %v689, %v643
        %v691 = vadd.f32 %v690, %v645
        %692 = vadd.xlane.f32.xlu0 %v691
        %v693 = vpop.xlane.xlu0 %692
        %v694 = vadd.f32 %v554, %v556
        %v695 = vadd.f32 %v694, %v649
        %v696 = vadd.f32 %v695, %v651
        %697 = vadd.xlane.f32.xlu0 %v696
        %v698 = vpop.xlane.xlu0 %697
        %v699 = vadd.f32 %v560, %v562
        %v700 = vadd.f32 %v699, %v655
        %v701 = vadd.f32 %v700, %v657
        %702 = vadd.xlane.f32.xlu0 %v701
        %v703 = vpop.xlane.xlu0 %702
        %vm704 = vcmask 7168
        %705 = vst.msk [vmem:[%s289] sm:$0xff] %vm704, %v683
        %706 = vst.msk [vmem:[%s289 + $0x8] sm:$0xff] %vm704, %v688
        %707 = vst.msk [vmem:[%s289 + $0x10] sm:$0xff] %vm704, %v693
        %708 = vst.msk [vmem:[%s289 + $0x18] sm:$0xff] %vm704, %v698
        %709 = vst.msk [vmem:[%s289 + $0x20] sm:$0xff] %vm704, %v703
        %v710 = vmul.f32 %v536, %v536
        %v711 = vmul.f32 %v538, %v538
        %v712 = vmul.f32 %v631, %v631
        %v713 = vmul.f32 %v633, %v633
        %v714 = vmul.f32 %v542, %v542
        %v715 = vmul.f32 %v544, %v544
        %v716 = vmul.f32 %v637, %v637
        %v717 = vmul.f32 %v639, %v639
        %v718 = vmul.f32 %v548, %v548
        %v719 = vmul.f32 %v550, %v550
        %v720 = vmul.f32 %v643, %v643
        %v721 = vmul.f32 %v645, %v645
        %v722 = vmul.f32 %v554, %v554
        %v723 = vmul.f32 %v556, %v556
        %v724 = vmul.f32 %v649, %v649
        %v725 = vmul.f32 %v651, %v651
        %v726 = vmul.f32 %v560, %v560
        %v727 = vmul.f32 %v562, %v562
        %v728 = vmul.f32 %v655, %v655
        %v729 = vmul.f32 %v657, %v657
        %v730 = vadd.f32 %v710, %v711
        %v731 = vadd.f32 %v730, %v712
        %v732 = vadd.f32 %v731, %v713
        %733 = vadd.xlane.f32.xlu0 %v732
        %v734 = vpop.xlane.xlu0 %733
        %v735 = vadd.f32 %v714, %v715
        %v736 = vadd.f32 %v735, %v716
        %v737 = vadd.f32 %v736, %v717
        %738 = vadd.xlane.f32.xlu0 %v737
        %v739 = vpop.xlane.xlu0 %738
        %v740 = vadd.f32 %v718, %v719
        %v741 = vadd.f32 %v740, %v720
        %v742 = vadd.f32 %v741, %v721
        %743 = vadd.xlane.f32.xlu0 %v742
        %v744 = vpop.xlane.xlu0 %743
        %v745 = vadd.f32 %v722, %v723
        %v746 = vadd.f32 %v745, %v724
        %v747 = vadd.f32 %v746, %v725
        %748 = vadd.xlane.f32.xlu0 %v747
        %v749 = vpop.xlane.xlu0 %748
        %v750 = vadd.f32 %v726, %v727
        %v751 = vadd.f32 %v750, %v728
        %v752 = vadd.f32 %v751, %v729
        %753 = vadd.xlane.f32.xlu0 %v752
        %v754 = vpop.xlane.xlu0 %753
        %755 = vst.msk [vmem:[%s294] sm:$0xff] %vm704, %v734
        %756 = vst.msk [vmem:[%s294 + $0x8] sm:$0xff] %vm704, %v739
        %757 = vst.msk [vmem:[%s294 + $0x10] sm:$0xff] %vm704, %v744
        %758 = vst.msk [vmem:[%s294 + $0x18] sm:$0xff] %vm704, %v749
        %759 = vst.msk [vmem:[%s294 + $0x20] sm:$0xff] %vm704, %v754
        %s760 = sand.u32 %s98, 1
        %s761 = scalar_lea.sflag [#allocation4], %s760
        %s762 = sand.u32 %s98, 1
        %s763 = smul.addr %s762, 160
        %s764 = scalar_lea.vmem [#allocation8], %s763
        %p765 = scmp.lt.s32.totalorder %s22, 1
        %s766 = scalar_select %p765, %s22, 1
        %s767 = smul.addr %s766, 5
        %s768 = smul.addr %s767, 8
        %s769 = scalar_lea.vmem %s4, %s768
        %p770 = scmp.lt.s32.totalorder %s22, 1
        %s771 = scalar_select %p770, %s22, 1
        %s772 = smul.addr %s771, 5
        %s773 = smul.addr %s772, 8
        %s774 = scalar_lea.vmem %s5, %s773
        // Predicated region
        $region45: #{tpu_custom_call.1} parent=31 // pred_check
          %p775 = pneg %p108
        $region46: #{tpu_custom_call.1} parent=31 // pred_check_branch
          %777 = sbr.rel (%p775) target = $region48
        $region47: #{tpu_custom_call.1} parent=31 // pred_region
          %s778 = smul.u32 4, %s22
          %s780 = ssub.s32 2560, 2560
          %781 = vsyncadd %s761, %s780
          %s782 = smul.addr %s778, 128
          %s783 = scalar_lea.hbm %s3, %s782
          %s784 = sshll.u32 %s764, 4
          %s785 = int_to_ptr.vmem [resolvable:$true] %s784
          %790 = dma.vmem_to_hbm [thread:$0]  %s785, 2560, %s783, %s761, 512, 1024, 32
        $region48: #{tpu_custom_call.1} parent=31 // pred_fallthru
          _
        // Predicated region
        $region49: #{tpu_custom_call.1} parent=31 // pred_check
          %p791 = pneg %p134
        $region50: #{tpu_custom_call.1} parent=31 // pred_check_branch
          %793 = sbr.rel (%p791) target = $region52
        $region51: #{tpu_custom_call.1} parent=31 // pred_region
          _
        $region52: #{tpu_custom_call.1} parent=31 // pred_fallthru
          _
        // Predicated region
        $region53: #{tpu_custom_call.1} parent=31 // pred_check
          %p794 = pneg %p160
        $region54: #{tpu_custom_call.1} parent=31 // pred_check_branch
          %796 = sbr.rel (%p794) target = $region56
        $region55: #{tpu_custom_call.1} parent=31 // pred_region
          _
        $region56: #{tpu_custom_call.1} parent=31 // pred_fallthru
          _
      $region32: #{tpu_custom_call.1} parent=5 // pred_fallthru
        _
      %p797 = scmp.le.s32.totalorder 2, %s17
      // Predicated region
      $region57: #{tpu_custom_call.1} parent=5 // pred_check
        %p798 = pneg %p797
      $region58: #{tpu_custom_call.1} parent=5 // pred_check_branch
        %800 = sbr.rel (%p798) target = $region60
      $region59: #{tpu_custom_call.1} parent=5 // pred_region
        %s801 = ssub.s32 %s17, 2
        // Predicated region
        $region61: #{tpu_custom_call.1} parent=59 // pred_check
          %p802 = pneg %p114
        $region62: #{tpu_custom_call.1} parent=59 // pred_check_branch
          %804 = sbr.rel (%p802) target = $region64
        $region63: #{tpu_custom_call.1} parent=59 // pred_region
          %s805 = sand.u32 %s99, 1
          %s806 = scalar_lea.sflag [#allocation4], %s805
          %s807 = sand.u32 %s99, 1
          %s808 = smul.addr %s807, 160
          %s809 = scalar_lea.vmem [#allocation8], %s808
          %810 = dma.done %s806, 2560
        $region64: #{tpu_custom_call.1} parent=59 // pred_fallthru
          _
        // Predicated region
        $region65: #{tpu_custom_call.1} parent=59 // pred_check
          %p811 = pneg %p140
        $region66: #{tpu_custom_call.1} parent=59 // pred_check_branch
          %813 = sbr.rel (%p811) target = $region68
        $region67: #{tpu_custom_call.1} parent=59 // pred_region
          %p814 = scmp.lt.s32.totalorder %s23, 1
          %s815 = scalar_select %p814, %s23, 1
          %s816 = smul.addr %s815, 5
          %s817 = smul.addr %s816, 8
          %s818 = scalar_lea.vmem %s4, %s817
        $region68: #{tpu_custom_call.1} parent=59 // pred_fallthru
          _
        // Predicated region
        $region69: #{tpu_custom_call.1} parent=59 // pred_check
          %p819 = pneg %p166
        $region70: #{tpu_custom_call.1} parent=59 // pred_check_branch
          %821 = sbr.rel (%p819) target = $region72
        $region71: #{tpu_custom_call.1} parent=59 // pred_region
          %p822 = scmp.lt.s32.totalorder %s23, 1
          %s823 = scalar_select %p822, %s23, 1
          %s824 = smul.addr %s823, 5
          %s825 = smul.addr %s824, 8
          %s826 = scalar_lea.vmem %s5, %s825
        $region72: #{tpu_custom_call.1} parent=59 // pred_fallthru
          _
      $region60: #{tpu_custom_call.1} parent=5 // pred_fallthru
        _
    $region6: #{tpu_custom_call.1} parent=1 // loop_footer
      %s21 = sadd.s32 1, %s17
    $region7: #{tpu_custom_call.1} parent=1 // loop_footer_branch
      %16 = sbr.rel target = $region3
    $region8: #{tpu_custom_call.1} parent=1 // loop_exit
      _
    %827 = vsyncpa [#allocation3], 1
    %s828 = scalar_lea.sflag [#allocation3], 1
    %829 = vsyncpa %s828, 1
    %830 = vsyncpa [#allocation6], 1
    %831 = vsyncpa [#allocation4], 1
    %s832 = scalar_lea.sflag [#allocation4], 1
    %833 = vsyncpa %s832, 1

</llo_original>
